<compile_context>
chip_gen: v7x
topology: tpu7x:2x2x1
jax: 0.10.0
libtpu: 0.0.40
codegen_flags: <defaults>
</compile_context>

<pallas_src>
import functools
import math

import jax
import jax.numpy as jnp
from jax.experimental import pallas as pl
from jax.experimental.pallas import tpu as pltpu

_LOG_EPS = math.log(1e-8)  # reference adds 1e-8 inside the log


def _distill_kernel(s_ref, t_ref, loss_ref, *, inv_student_temp, inv_teacher_temp,
                    compute_dtype):
    f32 = jnp.float32
    cdt = compute_dtype

    s_raw = s_ref[...]            # (TM, D) input dtype
    t_raw = t_ref[...]            # (TM, D) input dtype

    # --- student: temperature-scaled, shifted logits + logsumexp --------------------
    # Fused cast+scale: max on the raw dtype, then one D-wide (sub, mul) pass.
    s_max = jnp.max(s_raw, axis=-1, keepdims=True)
    s_shift = (s_raw - s_max).astype(cdt) * inv_student_temp            # (TM, D) cdt
    s_sumexp = jnp.sum(jnp.exp(s_shift), axis=-1, keepdims=True, dtype=f32)
    s_logz = jnp.log(s_sumexp)                                          # (TM, 1) f32

    # --- teacher: unnormalized softmax weights; 1/Z folded into the column ----------
    t_max = jnp.max(t_raw, axis=-1, keepdims=True)
    t_shift = (t_raw - t_max).astype(cdt) * inv_teacher_temp            # (TM, D) cdt
    t_exp = jnp.exp(t_shift)                                            # (TM, D) cdt
    t_z = jnp.sum(t_exp, axis=-1, keepdims=True, dtype=f32)             # (TM, 1) f32

    # --- row loss ---------------------------------------------------------------------
    #   max(log p_s, LOG_EPS) = max(s_shift, s_logz + LOG_EPS) - s_logz  and  sum(p_t) = 1
    #   =>  row = s_logz - sum(t_exp * max(s_shift, thr)) / t_z
    # which equals  -sum(p_t * max(log p_s, log 1e-8))  (the log(p+1e-8) clamp semantics)
    # without materializing a (TM, D) log-prob tile.
    thr = (s_logz + _LOG_EPS).astype(cdt)                               # (TM, 1) cdt
    dot = jnp.sum(t_exp * jnp.maximum(s_shift, thr),
                  axis=-1, keepdims=True, dtype=f32)                    # (TM, 1) f32
    loss_ref[...] = s_logz - dot / t_z


def _round_up(x, m):
    return ((x + m - 1) // m) * m


def _vmem_capacity_bytes():
    try:
        return int(pltpu.get_tpu_info().vmem_capacity_bytes)
    except Exception:
        return 64 * 1024 * 1024  # conservative fallback: v7x per-TensorCore VMEM


def _choose_row_tile(n_rows, d, in_itemsize, tile_budget_bytes):
    # Pipeline holds 2 inputs x 2 buffers of (TM, D) input dtype, plus ~4 live (TM, D)
    # compute-dtype intermediates after the formula rewrite (counted at 4 B to be safe).
    per_row_bytes = d * (4 * in_itemsize + 4 * 4)
    tm = int(tile_budget_bytes // per_row_bytes)
    tm = (tm // 16) * 16                      # f32 + bf16 sublane-pack aligned
    tm = min(tm, 2048)
    # Keep >= ~8 grid steps so v7x's two TensorCores each see several row tiles and the
    # per-core DMA/compute pipeline has depth (no-op for small n_rows).
    tm = min(tm, max(16, ((n_rows // 8) // 16) * 16))
    # Never exceed the (8-row aligned) input extent.
    tm = min(tm, _round_up(max(n_rows, 1), 8))
    return max(8, tm)


class TextDistillLoss:
    """JAX/Pallas port of the PyTorch TextDistillLoss module."""

    def __init__(self, warmup_teacher_temp_epochs, epochs, n_views,
                 warmup_teacher_temp, teacher_temp):
        self.warmup_teacher_temp_epochs = warmup_teacher_temp_epochs
        self.epochs = epochs
        self.n_views = n_views
        self.warmup_teacher_temp = warmup_teacher_temp
        self.teacher_temp = teacher_temp

    def __call__(self, student_output, teacher_output, epoch):
        # epoch is a Python int (as in the torch training loop); crossing the warmup
        # boundary retraces with the new static temperature (matches torch semantics).
        if epoch < self.warmup_teacher_temp_epochs:
            teacher_temp = self.warmup_teacher_temp
        else:
            teacher_temp = self.teacher_temp

        assert student_output.shape == teacher_output.shape
        assert student_output.dtype == teacher_output.dtype
        N, D = student_output.shape
        assert N % self.n_views == 0, "total rows must be divisible by n_views"

        in_dtype = jnp.dtype(student_output.dtype)
        # bf16 inputs: keep D-wide elementwise math in bf16 (native VPU/EUP on v6e/v7x);
        # the row reductions always accumulate in f32. Anything else computes in f32.
        compute_dtype = jnp.bfloat16 if in_dtype == jnp.bfloat16 else jnp.float32

        vmem_cap = _vmem_capacity_bytes()
        vmem_limit = min(int(vmem_cap * 0.75), 112 * 1024 * 1024)
        tm = _choose_row_tile(N, D, in_dtype.itemsize, int(vmem_limit * 0.9))
        num_tiles = pl.cdiv(N, tm)   # ragged last tile instead of a wrapper-side pad

        kernel = functools.partial(
            _distill_kernel,
            inv_student_temp=1.0 / 0.1,
            inv_teacher_temp=1.0 / float(teacher_temp),
            compute_dtype=compute_dtype,
        )

        cost = pl.CostEstimate(
            flops=int(10 * N * D),
            transcendentals=int(2 * N * D + 2 * N),
            bytes_accessed=int(2 * N * D * in_dtype.itemsize + N * 4),
        )

        row_losses = pl.pallas_call(
            kernel,
            out_shape=jax.ShapeDtypeStruct((N, 1), jnp.float32),
            grid_spec=pltpu.PrefetchScalarGridSpec(
                num_scalar_prefetch=0,
                grid=(num_tiles,),
                in_specs=[
                    pl.BlockSpec((tm, D), lambda i: (i, 0)),
                    pl.BlockSpec((tm, D), lambda i: (i, 0)),
                ],
                out_specs=pl.BlockSpec((tm, 1), lambda i: (i, 0)),
            ),
            compiler_params=pltpu.CompilerParams(
                dimension_semantics=("parallel",),
                vmem_limit_bytes=vmem_limit,
            ),
            cost_estimate=cost,
        )(student_output, teacher_output)

        # Glue: per-view mean, summed over views, divided by n_views (matches torch loop).
        per_view = row_losses[:, 0].reshape(self.n_views, N // self.n_views)
        return jnp.sum(jnp.mean(per_view, axis=1)) / self.n_views


def _reference_loss(student_output, teacher_output, epoch, module):
    """Pure-JAX reference mirroring the PyTorch forward exactly."""
    if epoch < module.warmup_teacher_temp_epochs:
        teacher_temp = module.warmup_teacher_temp
    else:
        teacher_temp = module.teacher_temp
    s_out = student_output.astype(jnp.float32) / 0.1
    t_out = teacher_output.astype(jnp.float32) / teacher_temp
    s_chunks = jnp.split(s_out, module.n_views, axis=0)
    t_chunks = jnp.split(t_out, module.n_views, axis=0)
    loss = 0.0
    for s, t in zip(s_chunks, t_chunks):
        s_prob = jax.nn.softmax(s, axis=1)
        t_prob = jax.nn.softmax(t, axis=1)
        loss += jnp.mean(jnp.sum(-t_prob * jnp.log(s_prob + 1e-8), axis=1))
    return loss / module.n_views


if __name__ == "__main__":
    key = jax.random.PRNGKey(0)
    k1, k2, k3, k4 = jax.random.split(key, 4)

    n_views = 2
    batch_per_view = 4
    hidden = 32
    N = n_views * batch_per_view

    # Moderate-magnitude features: softmax probabilities stay far above 1e-8, so the
    # in-kernel clamp (== log(p + 1e-8) semantics) is numerically indistinguishable
    # from the reference.
    student = 0.08 * jax.random.normal(k1, (N, hidden), dtype=jnp.float32)
    teacher = 0.08 * jax.random.normal(k2, (N, hidden), dtype=jnp.float32)

    module = TextDistillLoss(
        warmup_teacher_temp_epochs=5,
        epochs=20,
        n_views=n_views,
        warmup_teacher_temp=0.07,
        teacher_temp=0.04,
    )

    # Warmup branch (epoch < warmup_teacher_temp_epochs).
    epoch = 2
    loss = jax.block_until_ready(module(student, teacher, epoch))
    ref = jax.block_until_ready(_reference_loss(student, teacher, epoch, module))
    assert jnp.allclose(loss, ref, rtol=1e-3, atol=1e-3), (loss, ref)

    # Post-warmup branch (static teacher_temp).
    loss_post = jax.block_until_ready(module(student, teacher, 10))
    ref_post = jax.block_until_ready(_reference_loss(student, teacher, 10, module))
    assert jnp.allclose(loss_post, ref_post, rtol=1e-3, atol=1e-3), (loss_post, ref_post)

    # bf16 inputs: D-wide math runs in bf16 (halves HBM traffic + VPU/EUP work on
    # v6e/v7x); row reductions accumulate in f32.
    loss_bf16 = jax.block_until_ready(
        module(student.astype(jnp.bfloat16), teacher.astype(jnp.bfloat16), epoch))
    assert jnp.allclose(loss_bf16, ref, rtol=5e-2, atol=5e-2), (loss_bf16, ref)

    # Ragged last tile: N not divisible by tm exercises the no-pad path (OOB rows are
    # computed on garbage VMEM but never written back / never enter the reduction).
    N2 = n_views * 12  # 24 rows -> tm = 16, grid = 2, last tile ragged
    student2 = 0.08 * jax.random.normal(k3, (N2, hidden), dtype=jnp.float32)
    teacher2 = 0.08 * jax.random.normal(k4, (N2, hidden), dtype=jnp.float32)
    loss2 = jax.block_until_ready(module(student2, teacher2, epoch))
    ref2 = jax.block_until_ready(_reference_loss(student2, teacher2, epoch, module))
    assert jnp.allclose(loss2, ref2, rtol=1e-3, atol=1e-3), (loss2, ref2)

    print("KERNEL_OK")
</pallas_src>

<mosaic_0001>
module attributes {stable_mosaic.version = 11 : i64} {
  func.func @_distill_kernel(%arg0: i32, %arg1: memref<8x32xf32, #tpu.memory_space<vmem>>, %arg2: memref<8x32xf32, #tpu.memory_space<vmem>>, %arg3: memref<8x1xf32, #tpu.memory_space<vmem>>) attributes {dimension_semantics = [#tpu.dimension_semantics<parallel>], iteration_bounds = array<i64: 1>, scalar_prefetch = 0 : i64, scratch_operands = 0 : i64, tpu.core_type = #tpu.core_type<tc>, window_params = [{transform_indices = @transform_0, window_bounds = array<i64: 8, 32>}, {transform_indices = @transform_1, window_bounds = array<i64: 8, 32>}, {transform_indices = @transform_2, window_bounds = array<i64: 8, 1>}]} {
    %c0 = arith.constant 0 : index
    %c0_0 = arith.constant 0 : index
    %0 = vector.load %arg1[%c0, %c0_0] : memref<8x32xf32, #tpu.memory_space<vmem>>, vector<8x32xf32>
    %c0_1 = arith.constant 0 : index
    %c0_2 = arith.constant 0 : index
    %1 = vector.load %arg2[%c0_1, %c0_2] : memref<8x32xf32, #tpu.memory_space<vmem>>, vector<8x32xf32>
    %cst = arith.constant dense<0xFF800000> : vector<8xf32>
    %2 = vector.multi_reduction <maximumf>, %0, %cst [1] : vector<8x32xf32> to vector<8xf32>
    %3 = vector.shape_cast %2 : vector<8xf32> to vector<8x1xf32>
    %4 = vector.broadcast %3 : vector<8x1xf32> to vector<8x32xf32>
    %5 = arith.subf %0, %4 : vector<8x32xf32>
    %cst_3 = arith.constant 1.000000e+01 : f32
    %6 = vector.broadcast %cst_3 : f32 to vector<8x32xf32>
    %7 = arith.mulf %5, %6 : vector<8x32xf32>
    %8 = math.exp %7 : vector<8x32xf32>
    %cst_4 = arith.constant dense<0.000000e+00> : vector<8xf32>
    %9 = vector.multi_reduction <add>, %8, %cst_4 [1] : vector<8x32xf32> to vector<8xf32>
    %10 = vector.shape_cast %9 : vector<8xf32> to vector<8x1xf32>
    %11 = math.log %10 : vector<8x1xf32>
    %cst_5 = arith.constant dense<0xFF800000> : vector<8xf32>
    %12 = vector.multi_reduction <maximumf>, %1, %cst_5 [1] : vector<8x32xf32> to vector<8xf32>
    %13 = vector.shape_cast %12 : vector<8xf32> to vector<8x1xf32>
    %14 = vector.broadcast %13 : vector<8x1xf32> to vector<8x32xf32>
    %15 = arith.subf %1, %14 : vector<8x32xf32>
    %cst_6 = arith.constant 14.2857141 : f32
    %16 = vector.broadcast %cst_6 : f32 to vector<8x32xf32>
    %17 = arith.mulf %15, %16 : vector<8x32xf32>
    %18 = math.exp %17 : vector<8x32xf32>
    %cst_7 = arith.constant dense<0.000000e+00> : vector<8xf32>
    %19 = vector.multi_reduction <add>, %18, %cst_7 [1] : vector<8x32xf32> to vector<8xf32>
    %20 = vector.shape_cast %19 : vector<8xf32> to vector<8x1xf32>
    %cst_8 = arith.constant -18.420681 : f32
    %21 = vector.broadcast %cst_8 : f32 to vector<8x1xf32>
    %22 = arith.addf %11, %21 : vector<8x1xf32>
    %23 = vector.broadcast %22 : vector<8x1xf32> to vector<8x32xf32>
    %24 = arith.maximumf %7, %23 : vector<8x32xf32>
    %25 = arith.mulf %18, %24 : vector<8x32xf32>
    %cst_9 = arith.constant dense<0.000000e+00> : vector<8xf32>
    %26 = vector.multi_reduction <add>, %25, %cst_9 [1] : vector<8x32xf32> to vector<8xf32>
    %27 = vector.shape_cast %26 : vector<8xf32> to vector<8x1xf32>
    %28 = arith.divf %27, %20 : vector<8x1xf32>
    %29 = arith.subf %11, %28 : vector<8x1xf32>
    %c0_10 = arith.constant 0 : index
    %c0_11 = arith.constant 0 : index
    %30 = vector.load %arg3[%c0_10, %c0_11] : memref<8x1xf32, #tpu.memory_space<vmem>>, vector<8x1xf32>
    tpu.vector_store %arg3[%c0_10, %c0_11], %29 {strides = array<i32>} : memref<8x1xf32, #tpu.memory_space<vmem>>, vector<8x1xf32>,
    return
  }
  func.func @transform_0(%arg0: i32) -> (i32, i32) {
    %c0_i32 = arith.constant 0 : i32
    %c0_i32_0 = arith.constant 0 : i32
    return %arg0, %c0_i32 : i32, i32
  }
  func.func @transform_1(%arg0: i32) -> (i32, i32) {
    %c0_i32 = arith.constant 0 : i32
    %c0_i32_0 = arith.constant 0 : i32
    return %arg0, %c0_i32 : i32, i32
  }
  func.func @transform_2(%arg0: i32) -> (i32, i32) {
    %c0_i32 = arith.constant 0 : i32
    %c0_i32_0 = arith.constant 0 : i32
    return %arg0, %c0_i32 : i32, i32
  }
}

</mosaic_0001>

<llo_original>
// kernel: tpu_custom_call.1
$region0: #{tpu_custom_call.1}
  #allocation0 [shape = 'u32[]', space=smem, size = 0x4, offset = 0x4, fixed_abs, tag = 'smem constant byte address 0x4 - core index']
  #allocation1 [shape = 'u32[144,128]{1,0:T(1,128)}', space=vmem, size = 0x12000, scoped, tag = 'internal scratch']
  %s0 = inlined_call_operand.hbm [shape: f32[8,32], index: 0, kind: input, shape index: {}]
  %s1 = inlined_call_operand.hbm [shape: f32[8,32], index: 1, kind: input, shape index: {}]
  %s2 = inlined_call_operand.vmem [shape: f32[8,1], index: 2, kind: output, shape index: {}]
  %s3 = sld [smem:[#allocation0]]
  $region26: #{tpu_custom_call.1} parent=0
    _
  %s5 = ssub.s32 1, %s3
  %s6 = scalar_select 0, %s5, %s3
  $region1: #{tpu_custom_call.1} parent=0
    #allocation2 [shape = 'u8[4096]{0}', space=vmem, size = 0x1000, scoped, tag = 'input window, operand 0, single buffered']
    #allocation3 [shape = 's32[1]{0}', space=sflag, size = 0x4, scoped, tag = 'scoped memory for tpu_custom_call.1']
    #allocation4 [shape = 'u8[4096]{0}', space=vmem, size = 0x1000, scoped, tag = 'input window, operand 1, single buffered']
    #allocation5 [shape = 's32[1]{0}', space=sflag, size = 0x4, scoped, tag = 'scoped memory for tpu_custom_call.1']
    %7 = vsyncpa [#allocation3], 0
    %8 = vsyncpa [#allocation5], 0
    // Predicated region
    $region2: #{tpu_custom_call.1} parent=1 // pred_check
      _
    $region3: #{tpu_custom_call.1} parent=1 // pred_check_branch
      %10 = sbr.rel (0) target = $region5
    $region4: #{tpu_custom_call.1} parent=1 // pred_region
      %s12 = ssub.s32 128, 128
      %13 = vsyncadd [#allocation3], %s12
      %s15 = sshll.u32 [#allocation2], 4
      %s16 = int_to_ptr.vmem [resolvable:$true] %s15
      %18 = dma.hbm_to_vmem [thread:$0]  %s0, 128, %s16, [#allocation3]
    $region5: #{tpu_custom_call.1} parent=1 // pred_fallthru
      _
    // Predicated region
    $region6: #{tpu_custom_call.1} parent=1 // pred_check
      _
    $region7: #{tpu_custom_call.1} parent=1 // pred_check_branch
      %20 = sbr.rel (0) target = $region9
    $region8: #{tpu_custom_call.1} parent=1 // pred_region
      %s22 = ssub.s32 128, 128
      %23 = vsyncadd [#allocation5], %s22
      %s25 = sshll.u32 [#allocation4], 4
      %s26 = int_to_ptr.vmem [resolvable:$true] %s25
      %28 = dma.hbm_to_vmem [thread:$0]  %s1, 128, %s26, [#allocation5]
    $region9: #{tpu_custom_call.1} parent=1 // pred_fallthru
      _
    // Predicated region
    $region10: #{tpu_custom_call.1} parent=1 // pred_check
      _
    $region11: #{tpu_custom_call.1} parent=1 // pred_check_branch
      %30 = sbr.rel (0) target = $region13
    $region12: #{tpu_custom_call.1} parent=1 // pred_region
      %31 = dma.done [#allocation3], 128
    $region13: #{tpu_custom_call.1} parent=1 // pred_fallthru
      _
    // Predicated region
    $region14: #{tpu_custom_call.1} parent=1 // pred_check
      _
    $region15: #{tpu_custom_call.1} parent=1 // pred_check_branch
      %33 = sbr.rel (0) target = $region17
    $region16: #{tpu_custom_call.1} parent=1 // pred_region
      %34 = dma.done [#allocation5], 128
    $region17: #{tpu_custom_call.1} parent=1 // pred_fallthru
      _
    %v35 = vld [vmem:[#allocation2] sm:$0xff]
    %v36 = vld [vmem:[#allocation4] sm:$0xff]
    %vm37 = vcmask 261120
    %v38 = vsel %vm37, %v35, -inf
    %39 = vmax.xlane.f32.xlu0 %v38
    %v40 = vpop.xlane.xlu0 %39
    %v41 = vsub.f32 %v35, %v40
    %v42 = vmul.f32 %v41, 10.0
    %v43 = vmul.f32 %v42, 1.442695
    %v44 = vpow.pop %v43
    %v45 = vsel %vm37, %v44, 0.0
    %46 = vadd.xlane.f32.xlu0 %v45
    %v47 = vpop.xlane.xlu0 %46
    %v48 = vlog2.pop %v47
    %v49 = vmul.f32 %v48, 0.6931472
    %v50 = vsel %vm37, %v36, -inf
    %51 = vmax.xlane.f32.xlu0 %v50
    %v52 = vpop.xlane.xlu0 %51
    %v53 = vsub.f32 %v36, %v52
    %v54 = vmul.f32 %v53, 14.285714
    %v55 = vmul.f32 %v54, 1.442695
    %v56 = vpow.pop %v55
    %v57 = vsel %vm37, %v56, 0.0
    %58 = vadd.xlane.f32.xlu0 %v57
    %v59 = vpop.xlane.xlu0 %58
    %v60 = vadd.f32 %v49, -18.420681
    %v61 = vmax.f32 %v42, %v60
    %v62 = vmul.f32 %v56, %v61
    %v63 = vsel %vm37, %v62, 0.0
    %64 = vadd.xlane.f32.xlu0 %v63
    %v65 = vpop.xlane.xlu0 %64
    %v66 = vrcp.pop %v59
    %v67 = vmul.f32 %v65, %v66
    %v68 = vsub.f32 %v49, %v67
    %vm69 = vcmask 7168
    %70 = vst.msk [vmem:[%s2] sm:$0xff] %vm69, %v68
    // Predicated region
    $region18: #{tpu_custom_call.1} parent=1 // pred_check
      _
    $region19: #{tpu_custom_call.1} parent=1 // pred_check_branch
      %72 = sbr.rel (0) target = $region21
    $region20: #{tpu_custom_call.1} parent=1 // pred_region
      _
    $region21: #{tpu_custom_call.1} parent=1 // pred_fallthru
      _
    // Predicated region
    $region22: #{tpu_custom_call.1} parent=1 // pred_check
      _
    $region23: #{tpu_custom_call.1} parent=1 // pred_check_branch
      %74 = sbr.rel (0) target = $region25
    $region24: #{tpu_custom_call.1} parent=1 // pred_region
      _
    $region25: #{tpu_custom_call.1} parent=1 // pred_fallthru
      _
    %75 = vsyncpa [#allocation3], 1
    %76 = vsyncpa [#allocation5], 1

</llo_original>
